<compile_context>
chip_gen: v7x
topology: tpu7x:2x2x1
jax: 0.10.0
libtpu: 0.0.40
codegen_flags: <defaults>
</compile_context>

<pallas_src>
import functools

import jax
import jax.numpy as jnp
from jax import lax
from jax.experimental import pallas as pl
from jax.experimental.pallas import tpu as pltpu


def _msa_fused_kernel(x_ref, wqkv_ref, wp_ref, o_ref, y_ref, *, n_heads, size_head):
    """One batch block: fused QKV projection + per-(batch, head) softmax
    attention + output projection.  All matmuls feed the MXU with bf16
    operands and accumulate in f32."""
    H, D = n_heads, size_head
    HD = H * D
    Bb, N, C = x_ref.shape
    M = Bb * N

    # (Bb, N, C) -> (Bb*N, C): widen the MXU M-dim to the whole batch block.
    # (Minor dim unchanged -> cheap, well-supported reshape.)
    x = x_ref[...].reshape(M, C).astype(jnp.bfloat16)

    # Single lane-dense matmul for Q|K|V across all heads: (M, C) @ (C, 3*H*D).
    # The attention scale is pre-folded into the Q columns of wqkv (wrapper).
    qkv = jnp.dot(x, wqkv_ref[...], preferred_element_type=jnp.float32)

    for b in range(Bb):                           # static unroll: Bb, H small
        r0 = b * N
        for h in range(H):
            q = qkv[r0:r0 + N, h * D:(h + 1) * D].astype(jnp.bfloat16)
            k = qkv[r0:r0 + N, HD + h * D:HD + (h + 1) * D].astype(jnp.bfloat16)
            v = qkv[r0:r0 + N, 2 * HD + h * D:2 * HD + (h + 1) * D].astype(jnp.bfloat16)

            # Contract on the D axis directly (no materialized k.T / XLU transpose).
            s = lax.dot_general(q, k, (((1,), (1,)), ((), ())),
                                preferred_element_type=jnp.float32)       # (N, N)
            s = s - jnp.max(s, axis=-1, keepdims=True)
            p = jnp.exp(s)
            denom = jnp.sum(p, axis=-1, keepdims=True)                    # (N, 1) f32

            # Deferred normalization: scale the (N, D) p@v result instead of
            # the (N, N) probability matrix; reciprocal goes to the EUP slot.
            pv = jnp.dot(p.astype(jnp.bfloat16), v,
                         preferred_element_type=jnp.float32)              # (N, D)
            pv = pv * pl.reciprocal(denom, approx=True)

            # No lane-axis concat: drop each head into its slot of the VMEM slab.
            y_ref[r0:r0 + N, h * D:(h + 1) * D] = pv.astype(y_ref.dtype)

    # One lane-dense output projection (M, H*D) @ (H*D, Cp), f32 accumulation.
    # Cp is padded to a 128-multiple by the wrapper -> unmasked full-lane store.
    out = jnp.dot(y_ref[...], wp_ref[...], preferred_element_type=jnp.float32)
    o_ref[...] = out.reshape(o_ref.shape).astype(o_ref.dtype)


def pack_msa_params(wq, wk, wv, wp, scale):
    """One-time parameter prep (hoisted out of the per-step path).

    Packs per-head Q/K/V projections into a single (C, 3*H*D) bf16 matrix
    with the attention scale folded into the Q columns, and casts the output
    projection to bf16 with its column dim padded to a multiple of 128 so the
    kernel's final store is lane-dense (no-op for real ViT widths)."""
    H, C, D = wq.shape
    HD = H * D
    w_q = jnp.transpose(wq, (1, 0, 2)).reshape(C, HD) * jnp.float32(scale)
    w_k = jnp.transpose(wk, (1, 0, 2)).reshape(C, HD)
    w_v = jnp.transpose(wv, (1, 0, 2)).reshape(C, HD)
    w_qkv = jnp.concatenate([w_q, w_k, w_v], axis=-1).astype(jnp.bfloat16)

    c_out = wp.shape[1]
    c_pad = ((c_out + 127) // 128) * 128
    wp_b16 = wp.astype(jnp.bfloat16)
    if c_pad != c_out:
        wp_b16 = jnp.pad(wp_b16, ((0, 0), (0, c_pad - c_out)))
    return w_qkv, wp_b16


def multi_head_attention(x, w_qkv, wp_packed, n_heads, size_head,
                         *, num_batch_blocks=None):
    """
    x          : (B, N, C) float32
    w_qkv      : (C, 3*H*D) bf16 from pack_msa_params (scale folded into Q)
    wp_packed  : (H*D, Cp) bf16 output projection, Cp = C padded to 128-mult.
    returns (B, N, C) float32
    """
    B, N, C = x.shape
    H, D = n_heads, size_head
    HD = H * D
    Cp = wp_packed.shape[1]

    if num_batch_blocks is None:
        # Default 2 blocks -> one per v7x TensorCore (megacore).  On single-TC
        # v5e/v6e pass num_batch_blocks=1 to fold the batch into one step and
        # avoid per-step pipeline overhead.
        num_batch_blocks = 2 if (B >= 2 and B % 2 == 0) else 1
    assert B % num_batch_blocks == 0, "batch must divide evenly into blocks"
    Bb = B // num_batch_blocks

    result = pl.pallas_call(
        functools.partial(_msa_fused_kernel, n_heads=H, size_head=D),
        out_shape=jax.ShapeDtypeStruct((B, N, Cp), jnp.float32),
        grid_spec=pltpu.PrefetchScalarGridSpec(
            num_scalar_prefetch=0,
            grid=(num_batch_blocks,),
            in_specs=[
                pl.BlockSpec((Bb, N, C), lambda b: (b, 0, 0)),
                # Grid-invariant weights (constant index_map).
                pl.BlockSpec((C, 3 * HD), lambda b: (0, 0)),
                pl.BlockSpec((HD, Cp), lambda b: (0, 0)),
            ],
            out_specs=pl.BlockSpec((Bb, N, Cp), lambda b: (b, 0, 0)),
            scratch_shapes=[pltpu.VMEM((Bb * N, HD), jnp.bfloat16)],
        ),
        compiler_params=pltpu.CompilerParams(
            dimension_semantics=("parallel",),   # shard batch blocks across TCs
            vmem_limit_bytes=32 * 1024 * 1024,
        ),
    )(x, w_qkv, wp_packed)

    if Cp != C:
        result = result[..., :C]   # drop the lane-padding columns (zeros)
    return result


def _reference(x, wq, wk, wv, wp, scale):
    """Plain-JAX f32 reference mirroring the torch forward (eval mode)."""
    q = jnp.einsum("bnc,hcd->bhnd", x, wq)
    k = jnp.einsum("bnc,hcd->bhnd", x, wk)
    v = jnp.einsum("bnc,hcd->bhnd", x, wv)
    attn = jnp.einsum("bhqd,bhkd->bhqk", q, k) * scale
    attn = jax.nn.softmax(attn, axis=-1)
    o = jnp.einsum("bhqk,bhkd->bhqd", attn, v)
    B, H, N, D = o.shape
    o = jnp.transpose(o, (0, 2, 1, 3)).reshape(B, N, H * D)
    return o @ wp


if __name__ == "__main__":
    # Module hyperparameters (small, consistent with the forward pass).
    n_embd = 32      # C
    n_heads = 4      # H
    size_head = 16   # D
    B, N = 2, 8
    scale = size_head ** (-0.5)   # default: 1/sqrt(size_head)

    key = jax.random.PRNGKey(0)
    kx, kq, kk, kv, kp = jax.random.split(key, 5)

    x = jax.random.normal(kx, (B, N, n_embd), dtype=jnp.float32)
    # Deterministic synthetic weights (bias=False in the module defaults).
    wq = jax.random.normal(kq, (n_heads, n_embd, size_head), jnp.float32) * 0.05
    wk = jax.random.normal(kk, (n_heads, n_embd, size_head), jnp.float32) * 0.05
    wv = jax.random.normal(kv, (n_heads, n_embd, size_head), jnp.float32) * 0.05
    wp = jax.random.normal(kp, (n_heads * size_head, n_embd), jnp.float32) * 0.05

    # One-time parameter packing (bf16, scale folded, output columns padded).
    w_qkv, wp_b16 = pack_msa_params(wq, wk, wv, wp, scale)

    out = multi_head_attention(x, w_qkv, wp_b16, n_heads, size_head)
    out = jax.block_until_ready(out)

    ref = _reference(x, wq, wk, wv, wp, scale)
    assert out.shape == (B, N, n_embd)
    # bf16 MXU operands (f32 accumulation) + EUP approx reciprocal -> widened
    # tolerance vs the pure-f32 reference.
    assert jnp.allclose(out, ref, atol=2e-2, rtol=2e-2), "mismatch vs reference"

    print("KERNEL_OK")
</pallas_src>

<mosaic_0001>
module attributes {stable_mosaic.version = 11 : i64} {
  func.func @_msa_fused_kernel(%arg0: i32, %arg1: memref<1x8x32xf32, #tpu.memory_space<vmem>>, %arg2: memref<32x192xbf16, #tpu.memory_space<vmem>>, %arg3: memref<64x128xbf16, #tpu.memory_space<vmem>>, %arg4: memref<1x8x128xf32, #tpu.memory_space<vmem>>, %arg5: memref<8x64xbf16, #tpu.memory_space<vmem>>) attributes {dimension_semantics = [#tpu.dimension_semantics<parallel>], iteration_bounds = array<i64: 2>, scalar_prefetch = 0 : i64, scratch_operands = 1 : i64, tpu.core_type = #tpu.core_type<tc>, window_params = [{transform_indices = @transform_0, window_bounds = array<i64: 1, 8, 32>}, {pipeline_mode = #tpu.pipeline_mode<synchronous>, transform_indices = @transform_1, window_bounds = array<i64: 32, 192>}, {pipeline_mode = #tpu.pipeline_mode<synchronous>, transform_indices = @transform_2, window_bounds = array<i64: 64, 128>}, {transform_indices = @transform_3, window_bounds = array<i64: 1, 8, 128>}]} {
    %c0 = arith.constant 0 : index
    %c0_0 = arith.constant 0 : index
    %c0_1 = arith.constant 0 : index
    %0 = vector.load %arg1[%c0, %c0_0, %c0_1] : memref<1x8x32xf32, #tpu.memory_space<vmem>>, vector<1x8x32xf32>
    %1 = vector.shape_cast %0 : vector<1x8x32xf32> to vector<8x32xf32>
    %2 = arith.truncf %1 : vector<8x32xf32> to vector<8x32xbf16>
    %c0_2 = arith.constant 0 : index
    %c0_3 = arith.constant 0 : index
    %3 = vector.load %arg2[%c0_2, %c0_3] : memref<32x192xbf16, #tpu.memory_space<vmem>>, vector<32x192xbf16>
    %cst = arith.constant dense<0.000000e+00> : vector<8x192xf32>
    %4 = tpu.matmul %2, %3, %cst {dimension_numbers = #tpu.dot_dimension_numbers<[1], [0], [0], [1], [0, 0, 1, 1], [], []>} : vector<8x32xbf16>, vector<32x192xbf16>, vector<8x192xf32> -> vector<8x192xf32>
    %5 = vector.extract_strided_slice %4 {offsets = [0, 0], sizes = [8, 16], strides = [1, 1]} : vector<8x192xf32> to vector<8x16xf32>
    %6 = arith.truncf %5 : vector<8x16xf32> to vector<8x16xbf16>
    %7 = vector.extract_strided_slice %4 {offsets = [0, 64], sizes = [8, 16], strides = [1, 1]} : vector<8x192xf32> to vector<8x16xf32>
    %8 = arith.truncf %7 : vector<8x16xf32> to vector<8x16xbf16>
    %9 = vector.extract_strided_slice %4 {offsets = [0, 128], sizes = [8, 16], strides = [1, 1]} : vector<8x192xf32> to vector<8x16xf32>
    %10 = arith.truncf %9 : vector<8x16xf32> to vector<8x16xbf16>
    %cst_4 = arith.constant dense<0.000000e+00> : vector<8x8xf32>
    %11 = tpu.matmul %6, %8, %cst_4 {dimension_numbers = #tpu.dot_dimension_numbers<[1], [1], [0], [0], [0, 0, 1, 0], [], []>} : vector<8x16xbf16>, vector<8x16xbf16>, vector<8x8xf32> -> vector<8x8xf32>
    %cst_5 = arith.constant dense<0xFF800000> : vector<8xf32>
    %12 = vector.multi_reduction <maximumf>, %11, %cst_5 [1] : vector<8x8xf32> to vector<8xf32>
    %13 = vector.shape_cast %12 : vector<8xf32> to vector<8x1xf32>
    %14 = vector.broadcast %13 : vector<8x1xf32> to vector<8x8xf32>
    %15 = arith.subf %11, %14 : vector<8x8xf32>
    %16 = math.exp %15 : vector<8x8xf32>
    %cst_6 = arith.constant dense<0.000000e+00> : vector<8xf32>
    %17 = vector.multi_reduction <add>, %16, %cst_6 [1] : vector<8x8xf32> to vector<8xf32>
    %18 = vector.shape_cast %17 : vector<8xf32> to vector<8x1xf32>
    %19 = arith.truncf %16 : vector<8x8xf32> to vector<8x8xbf16>
    %cst_7 = arith.constant dense<0.000000e+00> : vector<8x16xf32>
    %20 = tpu.matmul %19, %10, %cst_7 {dimension_numbers = #tpu.dot_dimension_numbers<[1], [0], [0], [1], [0, 0, 1, 1], [], []>} : vector<8x8xbf16>, vector<8x16xbf16>, vector<8x16xf32> -> vector<8x16xf32>
    %21 = tpu.reciprocal %18 {approx = true} : vector<8x1xf32> -> vector<8x1xf32>
    %22 = vector.broadcast %21 : vector<8x1xf32> to vector<8x16xf32>
    %23 = arith.mulf %20, %22 : vector<8x16xf32>
    %24 = arith.truncf %23 : vector<8x16xf32> to vector<8x16xbf16>
    %c0_8 = arith.constant 0 : index
    %c0_9 = arith.constant 0 : index
    %25 = vector.load %arg5[%c0_8, %c0_9] : memref<8x64xbf16, #tpu.memory_space<vmem>>, vector<8x16xbf16>
    tpu.vector_store %arg5[%c0_8, %c0_9], %24 {strides = array<i32>} : memref<8x64xbf16, #tpu.memory_space<vmem>>, vector<8x16xbf16>,
    %26 = vector.extract_strided_slice %4 {offsets = [0, 16], sizes = [8, 16], strides = [1, 1]} : vector<8x192xf32> to vector<8x16xf32>
    %27 = arith.truncf %26 : vector<8x16xf32> to vector<8x16xbf16>
    %28 = vector.extract_strided_slice %4 {offsets = [0, 80], sizes = [8, 16], strides = [1, 1]} : vector<8x192xf32> to vector<8x16xf32>
    %29 = arith.truncf %28 : vector<8x16xf32> to vector<8x16xbf16>
    %30 = vector.extract_strided_slice %4 {offsets = [0, 144], sizes = [8, 16], strides = [1, 1]} : vector<8x192xf32> to vector<8x16xf32>
    %31 = arith.truncf %30 : vector<8x16xf32> to vector<8x16xbf16>
    %cst_10 = arith.constant dense<0.000000e+00> : vector<8x8xf32>
    %32 = tpu.matmul %27, %29, %cst_10 {dimension_numbers = #tpu.dot_dimension_numbers<[1], [1], [0], [0], [0, 0, 1, 0], [], []>} : vector<8x16xbf16>, vector<8x16xbf16>, vector<8x8xf32> -> vector<8x8xf32>
    %cst_11 = arith.constant dense<0xFF800000> : vector<8xf32>
    %33 = vector.multi_reduction <maximumf>, %32, %cst_11 [1] : vector<8x8xf32> to vector<8xf32>
    %34 = vector.shape_cast %33 : vector<8xf32> to vector<8x1xf32>
    %35 = vector.broadcast %34 : vector<8x1xf32> to vector<8x8xf32>
    %36 = arith.subf %32, %35 : vector<8x8xf32>
    %37 = math.exp %36 : vector<8x8xf32>
    %cst_12 = arith.constant dense<0.000000e+00> : vector<8xf32>
    %38 = vector.multi_reduction <add>, %37, %cst_12 [1] : vector<8x8xf32> to vector<8xf32>
    %39 = vector.shape_cast %38 : vector<8xf32> to vector<8x1xf32>
    %40 = arith.truncf %37 : vector<8x8xf32> to vector<8x8xbf16>
    %cst_13 = arith.constant dense<0.000000e+00> : vector<8x16xf32>
    %41 = tpu.matmul %40, %31, %cst_13 {dimension_numbers = #tpu.dot_dimension_numbers<[1], [0], [0], [1], [0, 0, 1, 1], [], []>} : vector<8x8xbf16>, vector<8x16xbf16>, vector<8x16xf32> -> vector<8x16xf32>
    %42 = tpu.reciprocal %39 {approx = true} : vector<8x1xf32> -> vector<8x1xf32>
    %43 = vector.broadcast %42 : vector<8x1xf32> to vector<8x16xf32>
    %44 = arith.mulf %41, %43 : vector<8x16xf32>
    %45 = arith.truncf %44 : vector<8x16xf32> to vector<8x16xbf16>
    %c0_14 = arith.constant 0 : index
    %c16 = arith.constant 16 : index
    %46 = vector.load %arg5[%c0_14, %c16] : memref<8x64xbf16, #tpu.memory_space<vmem>>, vector<8x16xbf16>
    tpu.vector_store %arg5[%c0_14, %c16], %45 {strides = array<i32>} : memref<8x64xbf16, #tpu.memory_space<vmem>>, vector<8x16xbf16>,
    %47 = vector.extract_strided_slice %4 {offsets = [0, 32], sizes = [8, 16], strides = [1, 1]} : vector<8x192xf32> to vector<8x16xf32>
    %48 = arith.truncf %47 : vector<8x16xf32> to vector<8x16xbf16>
    %49 = vector.extract_strided_slice %4 {offsets = [0, 96], sizes = [8, 16], strides = [1, 1]} : vector<8x192xf32> to vector<8x16xf32>
    %50 = arith.truncf %49 : vector<8x16xf32> to vector<8x16xbf16>
    %51 = vector.extract_strided_slice %4 {offsets = [0, 160], sizes = [8, 16], strides = [1, 1]} : vector<8x192xf32> to vector<8x16xf32>
    %52 = arith.truncf %51 : vector<8x16xf32> to vector<8x16xbf16>
    %cst_15 = arith.constant dense<0.000000e+00> : vector<8x8xf32>
    %53 = tpu.matmul %48, %50, %cst_15 {dimension_numbers = #tpu.dot_dimension_numbers<[1], [1], [0], [0], [0, 0, 1, 0], [], []>} : vector<8x16xbf16>, vector<8x16xbf16>, vector<8x8xf32> -> vector<8x8xf32>
    %cst_16 = arith.constant dense<0xFF800000> : vector<8xf32>
    %54 = vector.multi_reduction <maximumf>, %53, %cst_16 [1] : vector<8x8xf32> to vector<8xf32>
    %55 = vector.shape_cast %54 : vector<8xf32> to vector<8x1xf32>
    %56 = vector.broadcast %55 : vector<8x1xf32> to vector<8x8xf32>
    %57 = arith.subf %53, %56 : vector<8x8xf32>
    %58 = math.exp %57 : vector<8x8xf32>
    %cst_17 = arith.constant dense<0.000000e+00> : vector<8xf32>
    %59 = vector.multi_reduction <add>, %58, %cst_17 [1] : vector<8x8xf32> to vector<8xf32>
    %60 = vector.shape_cast %59 : vector<8xf32> to vector<8x1xf32>
    %61 = arith.truncf %58 : vector<8x8xf32> to vector<8x8xbf16>
    %cst_18 = arith.constant dense<0.000000e+00> : vector<8x16xf32>
    %62 = tpu.matmul %61, %52, %cst_18 {dimension_numbers = #tpu.dot_dimension_numbers<[1], [0], [0], [1], [0, 0, 1, 1], [], []>} : vector<8x8xbf16>, vector<8x16xbf16>, vector<8x16xf32> -> vector<8x16xf32>
    %63 = tpu.reciprocal %60 {approx = true} : vector<8x1xf32> -> vector<8x1xf32>
    %64 = vector.broadcast %63 : vector<8x1xf32> to vector<8x16xf32>
    %65 = arith.mulf %62, %64 : vector<8x16xf32>
    %66 = arith.truncf %65 : vector<8x16xf32> to vector<8x16xbf16>
    %c0_19 = arith.constant 0 : index
    %c32 = arith.constant 32 : index
    %67 = vector.load %arg5[%c0_19, %c32] : memref<8x64xbf16, #tpu.memory_space<vmem>>, vector<8x16xbf16>
    tpu.vector_store %arg5[%c0_19, %c32], %66 {strides = array<i32>} : memref<8x64xbf16, #tpu.memory_space<vmem>>, vector<8x16xbf16>,
    %68 = vector.extract_strided_slice %4 {offsets = [0, 48], sizes = [8, 16], strides = [1, 1]} : vector<8x192xf32> to vector<8x16xf32>
    %69 = arith.truncf %68 : vector<8x16xf32> to vector<8x16xbf16>
    %70 = vector.extract_strided_slice %4 {offsets = [0, 112], sizes = [8, 16], strides = [1, 1]} : vector<8x192xf32> to vector<8x16xf32>
    %71 = arith.truncf %70 : vector<8x16xf32> to vector<8x16xbf16>
    %72 = vector.extract_strided_slice %4 {offsets = [0, 176], sizes = [8, 16], strides = [1, 1]} : vector<8x192xf32> to vector<8x16xf32>
    %73 = arith.truncf %72 : vector<8x16xf32> to vector<8x16xbf16>
    %cst_20 = arith.constant dense<0.000000e+00> : vector<8x8xf32>
    %74 = tpu.matmul %69, %71, %cst_20 {dimension_numbers = #tpu.dot_dimension_numbers<[1], [1], [0], [0], [0, 0, 1, 0], [], []>} : vector<8x16xbf16>, vector<8x16xbf16>, vector<8x8xf32> -> vector<8x8xf32>
    %cst_21 = arith.constant dense<0xFF800000> : vector<8xf32>
    %75 = vector.multi_reduction <maximumf>, %74, %cst_21 [1] : vector<8x8xf32> to vector<8xf32>
    %76 = vector.shape_cast %75 : vector<8xf32> to vector<8x1xf32>
    %77 = vector.broadcast %76 : vector<8x1xf32> to vector<8x8xf32>
    %78 = arith.subf %74, %77 : vector<8x8xf32>
    %79 = math.exp %78 : vector<8x8xf32>
    %cst_22 = arith.constant dense<0.000000e+00> : vector<8xf32>
    %80 = vector.multi_reduction <add>, %79, %cst_22 [1] : vector<8x8xf32> to vector<8xf32>
    %81 = vector.shape_cast %80 : vector<8xf32> to vector<8x1xf32>
    %82 = arith.truncf %79 : vector<8x8xf32> to vector<8x8xbf16>
    %cst_23 = arith.constant dense<0.000000e+00> : vector<8x16xf32>
    %83 = tpu.matmul %82, %73, %cst_23 {dimension_numbers = #tpu.dot_dimension_numbers<[1], [0], [0], [1], [0, 0, 1, 1], [], []>} : vector<8x8xbf16>, vector<8x16xbf16>, vector<8x16xf32> -> vector<8x16xf32>
    %84 = tpu.reciprocal %81 {approx = true} : vector<8x1xf32> -> vector<8x1xf32>
    %85 = vector.broadcast %84 : vector<8x1xf32> to vector<8x16xf32>
    %86 = arith.mulf %83, %85 : vector<8x16xf32>
    %87 = arith.truncf %86 : vector<8x16xf32> to vector<8x16xbf16>
    %c0_24 = arith.constant 0 : index
    %c48 = arith.constant 48 : index
    %88 = vector.load %arg5[%c0_24, %c48] : memref<8x64xbf16, #tpu.memory_space<vmem>>, vector<8x16xbf16>
    tpu.vector_store %arg5[%c0_24, %c48], %87 {strides = array<i32>} : memref<8x64xbf16, #tpu.memory_space<vmem>>, vector<8x16xbf16>,
    %c0_25 = arith.constant 0 : index
    %c0_26 = arith.constant 0 : index
    %89 = vector.load %arg5[%c0_25, %c0_26] : memref<8x64xbf16, #tpu.memory_space<vmem>>, vector<8x64xbf16>
    %c0_27 = arith.constant 0 : index
    %c0_28 = arith.constant 0 : index
    %90 = vector.load %arg3[%c0_27, %c0_28] : memref<64x128xbf16, #tpu.memory_space<vmem>>, vector<64x128xbf16>
    %cst_29 = arith.constant dense<0.000000e+00> : vector<8x128xf32>
    %91 = tpu.matmul %89, %90, %cst_29 {dimension_numbers = #tpu.dot_dimension_numbers<[1], [0], [0], [1], [0, 0, 1, 1], [], []>} : vector<8x64xbf16>, vector<64x128xbf16>, vector<8x128xf32> -> vector<8x128xf32>
    %92 = vector.shape_cast %91 : vector<8x128xf32> to vector<1x8x128xf32>
    %c0_30 = arith.constant 0 : index
    %c0_31 = arith.constant 0 : index
    %c0_32 = arith.constant 0 : index
    %93 = vector.load %arg4[%c0_30, %c0_31, %c0_32] : memref<1x8x128xf32, #tpu.memory_space<vmem>>, vector<1x8x128xf32>
    tpu.vector_store %arg4[%c0_30, %c0_31, %c0_32], %92 {strides = array<i32>} : memref<1x8x128xf32, #tpu.memory_space<vmem>>, vector<1x8x128xf32>,
    return
  }
  func.func @transform_0(%arg0: i32) -> (i32, i32, i32) {
    %c0_i32 = arith.constant 0 : i32
    %c0_i32_0 = arith.constant 0 : i32
    %c0_i32_1 = arith.constant 0 : i32
    return %arg0, %c0_i32, %c0_i32_0 : i32, i32, i32
  }
  func.func @transform_1(%arg0: i32) -> (i32, i32) {
    %c0_i32 = arith.constant 0 : i32
    %c0_i32_0 = arith.constant 0 : i32
    %c0_i32_1 = arith.constant 0 : i32
    return %c0_i32, %c0_i32_0 : i32, i32
  }
  func.func @transform_2(%arg0: i32) -> (i32, i32) {
    %c0_i32 = arith.constant 0 : i32
    %c0_i32_0 = arith.constant 0 : i32
    %c0_i32_1 = arith.constant 0 : i32
    return %c0_i32, %c0_i32_0 : i32, i32
  }
  func.func @transform_3(%arg0: i32) -> (i32, i32, i32) {
    %c0_i32 = arith.constant 0 : i32
    %c0_i32_0 = arith.constant 0 : i32
    %c0_i32_1 = arith.constant 0 : i32
    return %arg0, %c0_i32, %c0_i32_0 : i32, i32, i32
  }
}

</mosaic_0001>

<llo_original>
// kernel: tpu_custom_call.1
$region0: #{tpu_custom_call.1}
  #allocation0 [shape = 'u32[]', space=smem, size = 0x4, offset = 0x4, fixed_abs, tag = 'smem constant byte address 0x4 - core index']
  #allocation1 [shape = 'u32[144,128]{1,0:T(1,128)}', space=vmem, size = 0x12000, scoped, tag = 'internal scratch']
  #allocation2 [shape = 'bf16[8,64]{1,0:T(8,128)(2,1)}', space=vmem, size = 0x800, scoped, tag = 'scratch operand']
  %s0 = inlined_call_operand.hbm [shape: f32[2,8,32], index: 0, kind: input, shape index: {}]
  %s1 = inlined_call_operand.hbm [shape: bf16[32,192], index: 1, kind: input, shape index: {}]
  %s2 = inlined_call_operand.hbm [shape: bf16[64,128], index: 2, kind: input, shape index: {}]
  %s3 = inlined_call_operand.hbm [shape: f32[2,8,128], index: 3, kind: output, shape index: {}]
  %s4 = sld [smem:[#allocation0]]
  $region57: #{tpu_custom_call.1} parent=0
    _
  %s6 = ssub.s32 1, %s4
  %s7 = scalar_select 0, %s6, %s4
  $region1: #{tpu_custom_call.1} parent=0
    #allocation3 [shape = 'u8[8192]{0}', space=vmem, size = 0x2000, scoped, tag = 'input window, operand 0']
    #allocation4 [shape = 's32[2]{0}', space=sflag, size = 0x8, scoped, tag = 'scoped memory for tpu_custom_call.1']
    #allocation5 [shape = 's32[2]{0}', space=sflag, size = 0x8, scoped, tag = 'scoped memory for tpu_custom_call.1']
    #allocation6 [shape = 'u8[16384]{0}', space=vmem, size = 0x4000, scoped, tag = 'input window, operand 1, single buffered']
    #allocation7 [shape = 's32[1]{0}', space=sflag, size = 0x4, scoped, tag = 'scoped memory for tpu_custom_call.1']
    #allocation8 [shape = 'u8[16384]{0}', space=vmem, size = 0x4000, scoped, tag = 'input window, operand 2, single buffered']
    #allocation9 [shape = 'u8[8192]{0}', space=vmem, size = 0x2000, scoped, tag = 'output window, operand 0']
    %8 = vsyncpa [#allocation4], 0
    %s9 = scalar_lea.sflag [#allocation4], 1
    %10 = vsyncpa %s9, 0
    %11 = vsyncpa [#allocation7], 0
    %12 = vsyncpa [#allocation5], 0
    %s13 = scalar_lea.sflag [#allocation5], 1
    %14 = vsyncpa %s13, 0
    loop: start=0, step=1, limit=4
    $region2: #{tpu_custom_call.1} parent=1 // loop_pre_header
      _
    $region3: #{tpu_custom_call.1} parent=1 // loop_header
      %s16 = sphi 0, %s20
      %p17 = scmp.ge.s32.totalorder %s16, 4
      %s26 = sphi 0, %s28
      %s29 = sphi 0, %s26
      %s30 = sphi 0, %s29
      %s46 = sphi 0, %s30
      %s50 = sphi 0, %s50
      %s52 = sphi 0, %s50
      %s53 = sphi 0, %s52
      %s67 = sphi 0, %s53
      %s71 = sphi 0, %s71
      %s73 = sphi 0, %s71
      %s74 = sphi 0, %s73
      %s88 = sphi 0, %s74
      %s94 = sphi 0, %s96
      %s97 = sphi 0, %s94
      %s98 = sphi 0, %s97
      %s114 = sphi 0, %s98
    $region4: #{tpu_custom_call.1} parent=1 // loop_header_branch
      %19 = sbr.rel (%p17) target = $region8
    $region5: #{tpu_custom_call.1} parent=1 // loop_body
      %s21 = ssub.s32 %s16, 1
      %s22 = ssub.s32 %s16, 2
      %s23 = sadd.s32 %s16, 1
      %s24 = ssub.s32 %s16, %s23
      %p25 = scmp.eq.s32.totalorder %s24, 0
      %s27 = sadd.s32 %s26, 1
      %s28 = scalar_select %p25, %s26, %s27
      %p31 = pneg %p25
      %p32 = scmp.eq.s32.totalorder %s16, 1
      %p33 = por %p31, %p32
      %p34 = scmp.ne.s32.totalorder %s26, %s29
      %p35 = scmp.eq.s32.totalorder %s16, 0
      %p36 = por %p34, %p35
      %p37 = scmp.ne.s32.totalorder %s26, %s29
      %p38 = scmp.eq.s32.totalorder %s21, 1
      %p39 = por %p37, %p38
      %p40 = scmp.ne.s32.totalorder %s29, %s30
      %p41 = scmp.eq.s32.totalorder %s21, 0
      %p42 = por %p40, %p41
      %p43 = scmp.ne.s32.totalorder %s29, %s30
      %p44 = scmp.eq.s32.totalorder %s22, 1
      %p45 = por %p43, %p44
      %p47 = scmp.ne.s32.totalorder %s30, %s46
      %p48 = scmp.eq.s32.totalorder %s22, 0
      %p49 = por %p47, %p48
      %s51 = sadd.s32 %s50, 1
      %p54 = scmp.eq.s32.totalorder %s16, 1
      %p55 = scmp.ne.s32.totalorder %s50, %s52
      %p56 = scmp.eq.s32.totalorder %s16, 0
      %p57 = por %p55, %p56
      %p58 = scmp.ne.s32.totalorder %s50, %s52
      %p59 = scmp.eq.s32.totalorder %s21, 1
      %p60 = por %p58, %p59
      %p61 = scmp.ne.s32.totalorder %s52, %s53
      %p62 = scmp.eq.s32.totalorder %s21, 0
      %p63 = por %p61, %p62
      %p64 = scmp.ne.s32.totalorder %s52, %s53
      %p65 = scmp.eq.s32.totalorder %s22, 1
      %p66 = por %p64, %p65
      %p68 = scmp.ne.s32.totalorder %s53, %s67
      %p69 = scmp.eq.s32.totalorder %s22, 0
      %p70 = por %p68, %p69
      %s72 = sadd.s32 %s71, 1
      %p75 = scmp.eq.s32.totalorder %s16, 1
      %p76 = scmp.ne.s32.totalorder %s71, %s73
      %p77 = scmp.eq.s32.totalorder %s16, 0
      %p78 = por %p76, %p77
      %p79 = scmp.ne.s32.totalorder %s71, %s73
      %p80 = scmp.eq.s32.totalorder %s21, 1
      %p81 = por %p79, %p80
      %p82 = scmp.ne.s32.totalorder %s73, %s74
      %p83 = scmp.eq.s32.totalorder %s21, 0
      %p84 = por %p82, %p83
      %p85 = scmp.ne.s32.totalorder %s73, %s74
      %p86 = scmp.eq.s32.totalorder %s22, 1
      %p87 = por %p85, %p86
      %p89 = scmp.ne.s32.totalorder %s74, %s88
      %p90 = scmp.eq.s32.totalorder %s22, 0
      %p91 = por %p89, %p90
      %s92 = ssub.s32 %s16, %s23
      %p93 = scmp.eq.s32.totalorder %s92, 0
      %s95 = sadd.s32 %s94, 1
      %s96 = scalar_select %p93, %s94, %s95
      %p99 = pneg %p93
      %p100 = scmp.eq.s32.totalorder %s16, 1
      %p101 = por %p99, %p100
      %p102 = scmp.ne.s32.totalorder %s94, %s97
      %p103 = scmp.eq.s32.totalorder %s16, 0
      %p104 = por %p102, %p103
      %p105 = scmp.ne.s32.totalorder %s94, %s97
      %p106 = scmp.eq.s32.totalorder %s21, 1
      %p107 = por %p105, %p106
      %p108 = scmp.ne.s32.totalorder %s97, %s98
      %p109 = scmp.eq.s32.totalorder %s21, 0
      %p110 = por %p108, %p109
      %p111 = scmp.ne.s32.totalorder %s97, %s98
      %p112 = scmp.eq.s32.totalorder %s22, 1
      %p113 = por %p111, %p112
      %p115 = scmp.ne.s32.totalorder %s98, %s114
      %p116 = scmp.eq.s32.totalorder %s22, 0
      %p117 = por %p115, %p116
      %p118 = scmp.le.s32.totalorder 1, %s16
      %p119 = scmp.lt.s32.totalorder %s16, 3
      %p120 = pnand %p118, %p119
      %p121 = pneg %p120
      // Predicated region
      $region9: #{tpu_custom_call.1} parent=5 // pred_check
        _
      $region10: #{tpu_custom_call.1} parent=5 // pred_check_branch
        %123 = sbr.rel (%p120) target = $region12
      $region11: #{tpu_custom_call.1} parent=5 // pred_region
        %s124 = ssub.s32 %s16, 1
        // Predicated region
        $region13: #{tpu_custom_call.1} parent=11 // pred_check
          %p125 = pneg %p63
        $region14: #{tpu_custom_call.1} parent=11 // pred_check_branch
          %127 = sbr.rel (%p125) target = $region16
        $region15: #{tpu_custom_call.1} parent=11 // pred_region
          %s129 = ssub.s32 512, 512
          %130 = vsyncadd [#allocation7], %s129
          %s131 = sshll.u32 [#allocation6], 4
          %s132 = int_to_ptr.vmem [resolvable:$true] %s131
          %137 = dma.hbm_to_vmem [thread:$0]  %s1, 512, %s132, [#allocation7], 128, 128, 8
        $region16: #{tpu_custom_call.1} parent=11 // pred_fallthru
          _
        // Predicated region
        $region17: #{tpu_custom_call.1} parent=11 // pred_check
          %p138 = pneg %p84
        $region18: #{tpu_custom_call.1} parent=11 // pred_check_branch
          %140 = sbr.rel (%p138) target = $region20
        $region19: #{tpu_custom_call.1} parent=11 // pred_region
          %s142 = ssub.s32 512, 512
          %143 = vsyncadd [#allocation7], %s142
          %s144 = sshll.u32 [#allocation8], 4
          %s145 = int_to_ptr.vmem [resolvable:$true] %s144
          %150 = dma.hbm_to_vmem [thread:$0]  %s2, 512, %s145, [#allocation7], 64, 64, 4
        $region20: #{tpu_custom_call.1} parent=11 // pred_fallthru
          _
      $region12: #{tpu_custom_call.1} parent=5 // pred_fallthru
        _
      %p151 = scmp.lt.s32.totalorder %s16, 2
      // Predicated region
      $region21: #{tpu_custom_call.1} parent=5 // pred_check
        %p152 = pneg %p151
      $region22: #{tpu_custom_call.1} parent=5 // pred_check_branch
        %154 = sbr.rel (%p152) target = $region24
      $region23: #{tpu_custom_call.1} parent=5 // pred_region
        // Predicated region
        $region25: #{tpu_custom_call.1} parent=23 // pred_check
          %p155 = pneg %p36
        $region26: #{tpu_custom_call.1} parent=23 // pred_check_branch
          %157 = sbr.rel (%p155) target = $region28
        $region27: #{tpu_custom_call.1} parent=23 // pred_region
          %s158 = sand.u32 %s26, 1
          %s159 = scalar_lea.sflag [#allocation4], %s158
          %s160 = sand.u32 %s26, 1
          %s161 = smul.addr %s160, 8
          %s162 = scalar_lea.vmem [#allocation3], %s161
          %s164 = ssub.s32 128, 128
          %165 = vsyncadd %s159, %s164
          %s166 = smul.addr %s16, 128
          %s167 = scalar_lea.hbm %s0, %s166
          %s169 = sshll.u32 %s162, 4
          %s170 = int_to_ptr.vmem [resolvable:$true] %s169
          %172 = dma.hbm_to_vmem [thread:$0]  %s167, 128, %s170, %s159
        $region28: #{tpu_custom_call.1} parent=23 // pred_fallthru
          _
      $region24: #{tpu_custom_call.1} parent=5 // pred_fallthru
        _
      %p173 = scmp.le.s32.totalorder 1, %s16
      %p174 = scmp.lt.s32.totalorder %s16, 3
      %p175 = pnand %p173, %p174
      %p176 = pneg %p175
      // Predicated region
      $region29: #{tpu_custom_call.1} parent=5 // pred_check
        _
      $region30: #{tpu_custom_call.1} parent=5 // pred_check_branch
        %178 = sbr.rel (%p175) target = $region32
      $region31: #{tpu_custom_call.1} parent=5 // pred_region
        %s179 = ssub.s32 %s16, 1
        %s180 = sand.u32 %s29, 1
        %s181 = scalar_lea.sflag [#allocation4], %s180
        %s182 = sand.u32 %s29, 1
        %s183 = smul.addr %s182, 8
        %s184 = scalar_lea.vmem [#allocation3], %s183
        // Predicated region
        $region33: #{tpu_custom_call.1} parent=31 // pred_check
          %p185 = pneg %p42
        $region34: #{tpu_custom_call.1} parent=31 // pred_check_branch
          %187 = sbr.rel (%p185) target = $region36
        $region35: #{tpu_custom_call.1} parent=31 // pred_region
          %188 = dma.done %s181, 128
        $region36: #{tpu_custom_call.1} parent=31 // pred_fallthru
          _
        // Predicated region
        $region37: #{tpu_custom_call.1} parent=31 // pred_check
          %p189 = pneg %p63
        $region38: #{tpu_custom_call.1} parent=31 // pred_check_branch
          %191 = sbr.rel (%p189) target = $region40
        $region39: #{tpu_custom_call.1} parent=31 // pred_region
          %192 = dma.done [#allocation7], 512
        $region40: #{tpu_custom_call.1} parent=31 // pred_fallthru
          _
        // Predicated region
        $region41: #{tpu_custom_call.1} parent=31 // pred_check
          %p193 = pneg %p84
        $region42: #{tpu_custom_call.1} parent=31 // pred_check_branch
          %195 = sbr.rel (%p193) target = $region44
        $region43: #{tpu_custom_call.1} parent=31 // pred_region
          %196 = dma.done [#allocation7], 512
        $region44: #{tpu_custom_call.1} parent=31 // pred_fallthru
          _
        %s197 = sand.u32 %s29, 1
        %s198 = scalar_lea.sflag [#allocation4], %s197
        %s199 = sand.u32 %s29, 1
        %s200 = smul.addr %s199, 8
        %s201 = scalar_lea.vmem [#allocation3], %s200
        %p202 = pneg %p42
        %p203 = pneg %p39
        %p204 = pneg %p63
        %p205 = pneg %p60
        %p206 = pneg %p84
        %p207 = pneg %p81
        %p208 = pneg %p110
        %p209 = pneg %p107
        %s210 = sand.u32 %s97, 1
        %s211 = scalar_lea.sflag [#allocation5], %s210
        %s212 = sand.u32 %s97, 1
        %s213 = smul.addr %s212, 8
        %s214 = scalar_lea.vmem [#allocation9], %s213
        %v216 = vld [vmem:[%s184] sm:$0xff]
        %v217 = vpack.c.bf16 %v216, %v216
        %v218 = vld [vmem:[#allocation6] sm:$0xff]
        %v219 = vld [vmem:[#allocation6 + $0x8] sm:$0xff]
        %v220 = vld [vmem:[#allocation6 + $0x10] sm:$0xff]
        %v221 = vld [vmem:[#allocation6 + $0x18] sm:$0xff]
        %v226 = vunpack.c.l.b16 %v218
        %v227 = vunpack.c.h.b16 %v218
        %v228 = vunpack.c.l.b16 %v219
        %v229 = vunpack.c.h.b16 %v219
        %v230 = vunpack.c.l.b16 %v220
        %v231 = vunpack.c.h.b16 %v220
        %v232 = vunpack.c.l.b16 %v221
        %v233 = vunpack.c.h.b16 %v221
        %v234 = vpack.c.b16 %v228, %v226
        %v235 = vpack.c.b16 %v229, %v227
        %v236 = vpack.c.b16 %v232, %v230
        %v237 = vpack.c.b16 %v233, %v231
        %vm242 = vcmask 261120
        %v244 = vsel %vm242, %v217, 0
        %246 = vmatprep.subr.bf16.mxu0 %v235
        %247 = vmatpush1.bf16.msra.mxu0 %v234
        %248 = vmatprep.subr.bf16.mxu0 %v237
        %249 = vmatpush1.bf16.msra.mxu0 %v236
        %250 = vmatprep.subr.bf16.mxu0 0
        %251 = vmatpush1.bf16.msra.mxu0 0
        %252 = vmatprep.subr.bf16.mxu0 0
        %253 = vmatpush1.bf16.msra.mxu0 0
        %254 = vmatprep.subr.bf16.mxu0 0
        %255 = vmatpush1.bf16.msra.mxu0 0
        %256 = vmatprep.subr.bf16.mxu0 0
        %257 = vmatpush1.bf16.msra.mxu0 0
        %258 = vmatprep.subr.bf16.mxu0 0
        %259 = vmatpush1.bf16.msra.mxu0 0
        %260 = vmatprep.subr.bf16.mxu0 0
        %261 = vmatpush1.bf16.msra.mxu0 0
        %262 = vmatprep.subr.bf16.mxu0 0
        %263 = vmatpush1.bf16.msra.mxu0 0
        %264 = vmatprep.subr.bf16.mxu0 0
        %265 = vmatpush1.bf16.msra.mxu0 0
        %266 = vmatprep.subr.bf16.mxu0 0
        %267 = vmatpush1.bf16.msra.mxu0 0
        %268 = vmatprep.subr.bf16.mxu0 0
        %269 = vmatpush1.bf16.msra.mxu0 0
        %270 = vmatprep.subr.bf16.mxu0 0
        %271 = vmatpush1.bf16.msra.mxu0 0
        %272 = vmatprep.subr.bf16.mxu0 0
        %273 = vmatpush1.bf16.msra.mxu0 0
        %274 = vmatprep.subr.bf16.mxu0 0
        %275 = vmatpush1.bf16.msra.mxu0 0
        %276 = vmatprep.subr.bf16.mxu0 0
        %277 = vmatpush1.bf16.msra.mxu0 0
        %278 = vmatprep.mubr.bf16.mxu0 0
        %279 = vmatmul.mubr.bf16.gmra.mrb[0].mxu0 %v244
        %v280 = vpop.f32.mrb[0].mxu0
        %v281 = vadd.f32 0.0, %v280
        %v282 = vpop.f32.mrb[0].mxu0
        %v283 = vadd.f32 0.0, %v282
        %v284 = vpop.f32.mrb[0].mxu0
        %v285 = vpop.f32.mrb[0].mxu0
        %286 = vdwg.mxu0
        %v287 = vpack.c.bf16 %v281, %v281
        %v288 = vpack.c.bf16 %v283, %v283
        %290 = vrot.lane.b32.xlu0 %v287, 64
        %v291 = vpop.permute.xlu0 %290
        %vm292 = vcmask 130048
        %v294 = vsel %vm292, %v287, 0
        %v297 = vsel %vm292, %v291, 0
        %299 = vmatprep.subr.bf16.mxu0 0
        %300 = vmatpush1.bf16.xpose.msra.mxu0 %v297
        %301 = vmatprep.subr.bf16.mxu0 0
        %302 = vmatpush1.bf16.xpose.msra.mxu0 0
        %303 = vmatprep.subr.bf16.mxu0 0
        %304 = vmatpush1.bf16.xpose.msra.mxu0 0
        %305 = vmatprep.subr.bf16.mxu0 0
        %306 = vmatpush1.bf16.xpose.msra.mxu0 0
        %307 = vmatprep.subr.bf16.mxu0 0
        %308 = vmatpush1.bf16.xpose.msra.mxu0 0
        %309 = vmatprep.subr.bf16.mxu0 0
        %310 = vmatpush1.bf16.xpose.msra.mxu0 0
        %311 = vmatprep.subr.bf16.mxu0 0
        %312 = vmatpush1.bf16.xpose.msra.mxu0 0
        %313 = vmatprep.subr.bf16.mxu0 0
        %314 = vmatpush1.bf16.xpose.msra.mxu0 0
        %315 = vmatprep.subr.bf16.mxu0 0
        %316 = vmatpush1.bf16.xpose.msra.mxu0 0
        %317 = vmatprep.subr.bf16.mxu0 0
        %318 = vmatpush1.bf16.xpose.msra.mxu0 0
        %319 = vmatprep.subr.bf16.mxu0 0
        %320 = vmatpush1.bf16.xpose.msra.mxu0 0
        %321 = vmatprep.subr.bf16.mxu0 0
        %322 = vmatpush1.bf16.xpose.msra.mxu0 0
        %323 = vmatprep.subr.bf16.mxu0 0
        %324 = vmatpush1.bf16.xpose.msra.mxu0 0
        %325 = vmatprep.subr.bf16.mxu0 0
        %326 = vmatpush1.bf16.xpose.msra.mxu0 0
        %327 = vmatprep.subr.bf16.mxu0 0
        %328 = vmatpush1.bf16.xpose.msra.mxu0 0
        %329 = vmatprep.subr.bf16.mxu0 0
        %330 = vmatpush1.bf16.xpose.msra.mxu0 0
        %331 = vmatprep.mubr.bf16.mxu0 0
        %332 = vmatmul.mubr.bf16.gmra.mrb[0].mxu0 %v294
        %v333 = vpop.f32.mrb[0].mxu0
        %v334 = vadd.f32 0.0, %v333
        %v335 = vpop.f32.mrb[0].mxu0
        %v336 = vpop.f32.mrb[0].mxu0
        %v337 = vpop.f32.mrb[0].mxu0
        %338 = vdwg.mxu0
        %vm339 = vcmask 64512
        %v340 = vsel %vm339, %v334, -inf
        %341 = vmax.xlane.f32.xlu0 %v340
        %v342 = vpop.xlane.xlu0 %341
        %v343 = vsub.f32 %v334, %v342
        %v344 = vmul.f32 %v343, 1.442695
        %v345 = vpow.pop %v344
        %v346 = vsel %vm339, %v345, 0.0
        %347 = vadd.xlane.f32.xlu0 %v346
        %v348 = vpop.xlane.xlu0 %347
        %v349 = vpack.c.bf16 %v345, %v345
        %v351 = vsel %vm339, %v349, 0
        %vm353 = vcmask 1043456
        %v355 = vsel %vm353, %v288, 0
        %357 = vmatprep.subr.bf16.mxu0 0
        %358 = vmatpush1.bf16.msra.mxu0 %v355
        %359 = vmatprep.subr.bf16.mxu0 0
        %360 = vmatpush1.bf16.msra.mxu0 0
        %361 = vmatprep.subr.bf16.mxu0 0
        %362 = vmatpush1.bf16.msra.mxu0 0
        %363 = vmatprep.subr.bf16.mxu0 0
        %364 = vmatpush1.bf16.msra.mxu0 0
        %365 = vmatprep.subr.bf16.mxu0 0
        %366 = vmatpush1.bf16.msra.mxu0 0
        %367 = vmatprep.subr.bf16.mxu0 0
        %368 = vmatpush1.bf16.msra.mxu0 0
        %369 = vmatprep.subr.bf16.mxu0 0
        %370 = vmatpush1.bf16.msra.mxu0 0
        %371 = vmatprep.subr.bf16.mxu0 0
        %372 = vmatpush1.bf16.msra.mxu0 0
        %373 = vmatprep.subr.bf16.mxu0 0
        %374 = vmatpush1.bf16.msra.mxu0 0
        %375 = vmatprep.subr.bf16.mxu0 0
        %376 = vmatpush1.bf16.msra.mxu0 0
        %377 = vmatprep.subr.bf16.mxu0 0
        %378 = vmatpush1.bf16.msra.mxu0 0
        %379 = vmatprep.subr.bf16.mxu0 0
        %380 = vmatpush1.bf16.msra.mxu0 0
        %381 = vmatprep.subr.bf16.mxu0 0
        %382 = vmatpush1.bf16.msra.mxu0 0
        %383 = vmatprep.subr.bf16.mxu0 0
        %384 = vmatpush1.bf16.msra.mxu0 0
        %385 = vmatprep.subr.bf16.mxu0 0
        %386 = vmatpush1.bf16.msra.mxu0 0
        %387 = vmatprep.subr.bf16.mxu0 0
        %388 = vmatpush1.bf16.msra.mxu0 0
        %389 = vmatprep.mubr.bf16.mxu0 0
        %390 = vmatmul.mubr.bf16.gmra.mrb[0].mxu0 %v351
        %v391 = vpop.f32.mrb[0].mxu0
        %v392 = vadd.f32 0.0, %v391
        %v393 = vpop.f32.mrb[0].mxu0
        %v394 = vpop.f32.mrb[0].mxu0
        %v395 = vpop.f32.mrb[0].mxu0
        %396 = vdwg.mxu0
        %v397 = vrcp.pop %v348
        %v398 = vmul.f32 %v392, %v397
        %v399 = vpack.c.bf16 %v398, %v398
        %vm400 = vcmask 125952
        %401 = vst.msk [vmem:[#allocation2] sm:$0xf] %vm400, %v399
        %402 = vrot.lane.b32.xlu0 %v287, 112
        %v403 = vpop.permute.xlu0 %402
        %404 = vrot.lane.b32.xlu0 %v287, 48
        %v405 = vpop.permute.xlu0 %404
        %v407 = vsel %vm292, %v403, 0
        %v410 = vsel %vm292, %v405, 0
        %412 = vmatprep.subr.bf16.mxu0 0
        %413 = vmatpush1.bf16.xpose.msra.mxu0 %v410
        %414 = vmatprep.subr.bf16.mxu0 0
        %415 = vmatpush1.bf16.xpose.msra.mxu0 0
        %416 = vmatprep.subr.bf16.mxu0 0
        %417 = vmatpush1.bf16.xpose.msra.mxu0 0
        %418 = vmatprep.subr.bf16.mxu0 0
        %419 = vmatpush1.bf16.xpose.msra.mxu0 0
        %420 = vmatprep.subr.bf16.mxu0 0
        %421 = vmatpush1.bf16.xpose.msra.mxu0 0
        %422 = vmatprep.subr.bf16.mxu0 0
        %423 = vmatpush1.bf16.xpose.msra.mxu0 0
        %424 = vmatprep.subr.bf16.mxu0 0
        %425 = vmatpush1.bf16.xpose.msra.mxu0 0
        %426 = vmatprep.subr.bf16.mxu0 0
        %427 = vmatpush1.bf16.xpose.msra.mxu0 0
        %428 = vmatprep.subr.bf16.mxu0 0
        %429 = vmatpush1.bf16.xpose.msra.mxu0 0
        %430 = vmatprep.subr.bf16.mxu0 0
        %431 = vmatpush1.bf16.xpose.msra.mxu0 0
        %432 = vmatprep.subr.bf16.mxu0 0
        %433 = vmatpush1.bf16.xpose.msra.mxu0 0
        %434 = vmatprep.subr.bf16.mxu0 0
        %435 = vmatpush1.bf16.xpose.msra.mxu0 0
        %436 = vmatprep.subr.bf16.mxu0 0
        %437 = vmatpush1.bf16.xpose.msra.mxu0 0
        %438 = vmatprep.subr.bf16.mxu0 0
        %439 = vmatpush1.bf16.xpose.msra.mxu0 0
        %440 = vmatprep.subr.bf16.mxu0 0
        %441 = vmatpush1.bf16.xpose.msra.mxu0 0
        %442 = vmatprep.subr.bf16.mxu0 0
        %443 = vmatpush1.bf16.xpose.msra.mxu0 0
        %444 = vmatprep.mubr.bf16.mxu0 0
        %445 = vmatmul.mubr.bf16.gmra.mrb[0].mxu0 %v407
        %v446 = vpop.f32.mrb[0].mxu0
        %v447 = vadd.f32 0.0, %v446
        %v448 = vpop.f32.mrb[0].mxu0
        %v449 = vpop.f32.mrb[0].mxu0
        %v450 = vpop.f32.mrb[0].mxu0
        %451 = vdwg.mxu0
        %v452 = vsel %vm339, %v447, -inf
        %453 = vmax.xlane.f32.xlu0 %v452
        %v454 = vpop.xlane.xlu0 %453
        %v455 = vsub.f32 %v447, %v454
        %v456 = vmul.f32 %v455, 1.442695
        %v457 = vpow.pop %v456
        %v458 = vsel %vm339, %v457, 0.0
        %459 = vadd.xlane.f32.xlu0 %v458
        %v460 = vpop.xlane.xlu0 %459
        %v461 = vpack.c.bf16 %v457, %v457
        %463 = vrot.lane.b32.xlu0 %v288, 112
        %v464 = vpop.permute.xlu0 %463
        %v466 = vsel %vm339, %v461, 0
        %v469 = vsel %vm353, %v464, 0
        %471 = vmatprep.subr.bf16.mxu0 0
        %472 = vmatpush1.bf16.msra.mxu0 %v469
        %473 = vmatprep.subr.bf16.mxu0 0
        %474 = vmatpush1.bf16.msra.mxu0 0
        %475 = vmatprep.subr.bf16.mxu0 0
        %476 = vmatpush1.bf16.msra.mxu0 0
        %477 = vmatprep.subr.bf16.mxu0 0
        %478 = vmatpush1.bf16.msra.mxu0 0
        %479 = vmatprep.subr.bf16.mxu0 0
        %480 = vmatpush1.bf16.msra.mxu0 0
        %481 = vmatprep.subr.bf16.mxu0 0
        %482 = vmatpush1.bf16.msra.mxu0 0
        %483 = vmatprep.subr.bf16.mxu0 0
        %484 = vmatpush1.bf16.msra.mxu0 0
        %485 = vmatprep.subr.bf16.mxu0 0
        %486 = vmatpush1.bf16.msra.mxu0 0
        %487 = vmatprep.subr.bf16.mxu0 0
        %488 = vmatpush1.bf16.msra.mxu0 0
        %489 = vmatprep.subr.bf16.mxu0 0
        %490 = vmatpush1.bf16.msra.mxu0 0
        %491 = vmatprep.subr.bf16.mxu0 0
        %492 = vmatpush1.bf16.msra.mxu0 0
        %493 = vmatprep.subr.bf16.mxu0 0
        %494 = vmatpush1.bf16.msra.mxu0 0
        %495 = vmatprep.subr.bf16.mxu0 0
        %496 = vmatpush1.bf16.msra.mxu0 0
        %497 = vmatprep.subr.bf16.mxu0 0
        %498 = vmatpush1.bf16.msra.mxu0 0
        %499 = vmatprep.subr.bf16.mxu0 0
        %500 = vmatpush1.bf16.msra.mxu0 0
        %501 = vmatprep.subr.bf16.mxu0 0
        %502 = vmatpush1.bf16.msra.mxu0 0
        %503 = vmatprep.mubr.bf16.mxu0 0
        %504 = vmatmul.mubr.bf16.gmra.mrb[0].mxu0 %v466
        %v505 = vpop.f32.mrb[0].mxu0
        %v506 = vadd.f32 0.0, %v505
        %v507 = vpop.f32.mrb[0].mxu0
        %v508 = vpop.f32.mrb[0].mxu0
        %v509 = vpop.f32.mrb[0].mxu0
        %510 = vdwg.mxu0
        %v511 = vrcp.pop %v460
        %v512 = vmul.f32 %v506, %v511
        %v513 = vpack.c.bf16 %v512, %v512
        %v515 = vunpack.c.l.b16 %v513
        %v516 = vpack.c.b16 %v515, %v515
        %517 = vrot.lane.b32.xlu0 %v516, 16
        %v518 = vpop.permute.xlu0 %517
        %vm520 = vcmask 257152
        %521 = vst.msk [vmem:[#allocation2] sm:$0xf] %vm520, %v518
        %522 = vrot.lane.b32.xlu0 %v287, 96
        %v523 = vpop.permute.xlu0 %522
        %524 = vrot.lane.b32.xlu0 %v287, 32
        %v525 = vpop.permute.xlu0 %524
        %v527 = vsel %vm292, %v523, 0
        %v530 = vsel %vm292, %v525, 0
        %532 = vmatprep.subr.bf16.mxu0 0
        %533 = vmatpush1.bf16.xpose.msra.mxu0 %v530
        %534 = vmatprep.subr.bf16.mxu0 0
        %535 = vmatpush1.bf16.xpose.msra.mxu0 0
        %536 = vmatprep.subr.bf16.mxu0 0
        %537 = vmatpush1.bf16.xpose.msra.mxu0 0
        %538 = vmatprep.subr.bf16.mxu0 0
        %539 = vmatpush1.bf16.xpose.msra.mxu0 0
        %540 = vmatprep.subr.bf16.mxu0 0
        %541 = vmatpush1.bf16.xpose.msra.mxu0 0
        %542 = vmatprep.subr.bf16.mxu0 0
        %543 = vmatpush1.bf16.xpose.msra.mxu0 0
        %544 = vmatprep.subr.bf16.mxu0 0
        %545 = vmatpush1.bf16.xpose.msra.mxu0 0
        %546 = vmatprep.subr.bf16.mxu0 0
        %547 = vmatpush1.bf16.xpose.msra.mxu0 0
        %548 = vmatprep.subr.bf16.mxu0 0
        %549 = vmatpush1.bf16.xpose.msra.mxu0 0
        %550 = vmatprep.subr.bf16.mxu0 0
        %551 = vmatpush1.bf16.xpose.msra.mxu0 0
        %552 = vmatprep.subr.bf16.mxu0 0
        %553 = vmatpush1.bf16.xpose.msra.mxu0 0
        %554 = vmatprep.subr.bf16.mxu0 0
        %555 = vmatpush1.bf16.xpose.msra.mxu0 0
        %556 = vmatprep.subr.bf16.mxu0 0
        %557 = vmatpush1.bf16.xpose.msra.mxu0 0
        %558 = vmatprep.subr.bf16.mxu0 0
        %559 = vmatpush1.bf16.xpose.msra.mxu0 0
        %560 = vmatprep.subr.bf16.mxu0 0
        %561 = vmatpush1.bf16.xpose.msra.mxu0 0
        %562 = vmatprep.subr.bf16.mxu0 0
        %563 = vmatpush1.bf16.xpose.msra.mxu0 0
        %564 = vmatprep.mubr.bf16.mxu0 0
        %565 = vmatmul.mubr.bf16.gmra.mrb[0].mxu0 %v527
        %v566 = vpop.f32.mrb[0].mxu0
        %v567 = vadd.f32 0.0, %v566
        %v568 = vpop.f32.mrb[0].mxu0
        %v569 = vpop.f32.mrb[0].mxu0
        %v570 = vpop.f32.mrb[0].mxu0
        %571 = vdwg.mxu0
        %v572 = vsel %vm339, %v567, -inf
        %573 = vmax.xlane.f32.xlu0 %v572
        %v574 = vpop.xlane.xlu0 %573
        %v575 = vsub.f32 %v567, %v574
        %v576 = vmul.f32 %v575, 1.442695
        %v577 = vpow.pop %v576
        %v578 = vsel %vm339, %v577, 0.0
        %579 = vadd.xlane.f32.xlu0 %v578
        %v580 = vpop.xlane.xlu0 %579
        %v581 = vpack.c.bf16 %v577, %v577
        %582 = vrot.lane.b32.xlu0 %v288, 96
        %v583 = vpop.permute.xlu0 %582
        %v585 = vsel %vm339, %v581, 0
        %v588 = vsel %vm353, %v583, 0
        %590 = vmatprep.subr.bf16.mxu0 0
        %591 = vmatpush1.bf16.msra.mxu0 %v588
        %592 = vmatprep.subr.bf16.mxu0 0
        %593 = vmatpush1.bf16.msra.mxu0 0
        %594 = vmatprep.subr.bf16.mxu0 0
        %595 = vmatpush1.bf16.msra.mxu0 0
        %596 = vmatprep.subr.bf16.mxu0 0
        %597 = vmatpush1.bf16.msra.mxu0 0
        %598 = vmatprep.subr.bf16.mxu0 0
        %599 = vmatpush1.bf16.msra.mxu0 0
        %600 = vmatprep.subr.bf16.mxu0 0
        %601 = vmatpush1.bf16.msra.mxu0 0
        %602 = vmatprep.subr.bf16.mxu0 0
        %603 = vmatpush1.bf16.msra.mxu0 0
        %604 = vmatprep.subr.bf16.mxu0 0
        %605 = vmatpush1.bf16.msra.mxu0 0
        %606 = vmatprep.subr.bf16.mxu0 0
        %607 = vmatpush1.bf16.msra.mxu0 0
        %608 = vmatprep.subr.bf16.mxu0 0
        %609 = vmatpush1.bf16.msra.mxu0 0
        %610 = vmatprep.subr.bf16.mxu0 0
        %611 = vmatpush1.bf16.msra.mxu0 0
        %612 = vmatprep.subr.bf16.mxu0 0
        %613 = vmatpush1.bf16.msra.mxu0 0
        %614 = vmatprep.subr.bf16.mxu0 0
        %615 = vmatpush1.bf16.msra.mxu0 0
        %616 = vmatprep.subr.bf16.mxu0 0
        %617 = vmatpush1.bf16.msra.mxu0 0
        %618 = vmatprep.subr.bf16.mxu0 0
        %619 = vmatpush1.bf16.msra.mxu0 0
        %620 = vmatprep.subr.bf16.mxu0 0
        %621 = vmatpush1.bf16.msra.mxu0 0
        %622 = vmatprep.mubr.bf16.mxu0 0
        %623 = vmatmul.mubr.bf16.gmra.mrb[0].mxu0 %v585
        %v624 = vpop.f32.mrb[0].mxu0
        %v625 = vadd.f32 0.0, %v624
        %v626 = vpop.f32.mrb[0].mxu0
        %v627 = vpop.f32.mrb[0].mxu0
        %v628 = vpop.f32.mrb[0].mxu0
        %629 = vdwg.mxu0
        %v630 = vrcp.pop %v580
        %v631 = vmul.f32 %v625, %v630
        %v632 = vpack.c.bf16 %v631, %v631
        %v634 = vunpack.c.l.b16 %v632
        %v635 = vpack.c.b16 %v634, %v634
        %636 = vrot.lane.b32.xlu0 %v635, 32
        %v637 = vpop.permute.xlu0 %636
        %vm639 = vcmask 388352
        %640 = vst.msk [vmem:[#allocation2] sm:$0xf] %vm639, %v637
        %641 = vrot.lane.b32.xlu0 %v287, 80
        %v642 = vpop.permute.xlu0 %641
        %643 = vrot.lane.b32.xlu0 %v287, 16
        %v644 = vpop.permute.xlu0 %643
        %v646 = vsel %vm292, %v642, 0
        %v649 = vsel %vm292, %v644, 0
        %651 = vmatprep.subr.bf16.mxu0 0
        %652 = vmatpush1.bf16.xpose.msra.mxu0 %v649
        %653 = vmatprep.subr.bf16.mxu0 0
        %654 = vmatpush1.bf16.xpose.msra.mxu0 0
        %655 = vmatprep.subr.bf16.mxu0 0
        %656 = vmatpush1.bf16.xpose.msra.mxu0 0
        %657 = vmatprep.subr.bf16.mxu0 0
        %658 = vmatpush1.bf16.xpose.msra.mxu0 0
        %659 = vmatprep.subr.bf16.mxu0 0
        %660 = vmatpush1.bf16.xpose.msra.mxu0 0
        %661 = vmatprep.subr.bf16.mxu0 0
        %662 = vmatpush1.bf16.xpose.msra.mxu0 0
        %663 = vmatprep.subr.bf16.mxu0 0
        %664 = vmatpush1.bf16.xpose.msra.mxu0 0
        %665 = vmatprep.subr.bf16.mxu0 0
        %666 = vmatpush1.bf16.xpose.msra.mxu0 0
        %667 = vmatprep.subr.bf16.mxu0 0
        %668 = vmatpush1.bf16.xpose.msra.mxu0 0
        %669 = vmatprep.subr.bf16.mxu0 0
        %670 = vmatpush1.bf16.xpose.msra.mxu0 0
        %671 = vmatprep.subr.bf16.mxu0 0
        %672 = vmatpush1.bf16.xpose.msra.mxu0 0
        %673 = vmatprep.subr.bf16.mxu0 0
        %674 = vmatpush1.bf16.xpose.msra.mxu0 0
        %675 = vmatprep.subr.bf16.mxu0 0
        %676 = vmatpush1.bf16.xpose.msra.mxu0 0
        %677 = vmatprep.subr.bf16.mxu0 0
        %678 = vmatpush1.bf16.xpose.msra.mxu0 0
        %679 = vmatprep.subr.bf16.mxu0 0
        %680 = vmatpush1.bf16.xpose.msra.mxu0 0
        %681 = vmatprep.subr.bf16.mxu0 0
        %682 = vmatpush1.bf16.xpose.msra.mxu0 0
        %683 = vmatprep.mubr.bf16.mxu0 0
        %684 = vmatmul.mubr.bf16.gmra.mrb[0].mxu0 %v646
        %v685 = vpop.f32.mrb[0].mxu0
        %v686 = vadd.f32 0.0, %v685
        %v687 = vpop.f32.mrb[0].mxu0
        %v688 = vpop.f32.mrb[0].mxu0
        %v689 = vpop.f32.mrb[0].mxu0
        %690 = vdwg.mxu0
        %v691 = vsel %vm339, %v686, -inf
        %692 = vmax.xlane.f32.xlu0 %v691
        %v693 = vpop.xlane.xlu0 %692
        %v694 = vsub.f32 %v686, %v693
        %v695 = vmul.f32 %v694, 1.442695
        %v696 = vpow.pop %v695
        %v697 = vsel %vm339, %v696, 0.0
        %698 = vadd.xlane.f32.xlu0 %v697
        %v699 = vpop.xlane.xlu0 %698
        %v700 = vpack.c.bf16 %v696, %v696
        %701 = vrot.lane.b32.xlu0 %v288, 80
        %v702 = vpop.permute.xlu0 %701
        %v704 = vsel %vm339, %v700, 0
        %v707 = vsel %vm353, %v702, 0
        %709 = vmatprep.subr.bf16.mxu0 0
        %710 = vmatpush1.bf16.msra.mxu0 %v707
        %711 = vmatprep.subr.bf16.mxu0 0
        %712 = vmatpush1.bf16.msra.mxu0 0
        %713 = vmatprep.subr.bf16.mxu0 0
        %714 = vmatpush1.bf16.msra.mxu0 0
        %715 = vmatprep.subr.bf16.mxu0 0
        %716 = vmatpush1.bf16.msra.mxu0 0
        %717 = vmatprep.subr.bf16.mxu0 0
        %718 = vmatpush1.bf16.msra.mxu0 0
        %719 = vmatprep.subr.bf16.mxu0 0
        %720 = vmatpush1.bf16.msra.mxu0 0
        %721 = vmatprep.subr.bf16.mxu0 0
        %722 = vmatpush1.bf16.msra.mxu0 0
        %723 = vmatprep.subr.bf16.mxu0 0
        %724 = vmatpush1.bf16.msra.mxu0 0
        %725 = vmatprep.subr.bf16.mxu0 0
        %726 = vmatpush1.bf16.msra.mxu0 0
        %727 = vmatprep.subr.bf16.mxu0 0
        %728 = vmatpush1.bf16.msra.mxu0 0
        %729 = vmatprep.subr.bf16.mxu0 0
        %730 = vmatpush1.bf16.msra.mxu0 0
        %731 = vmatprep.subr.bf16.mxu0 0
        %732 = vmatpush1.bf16.msra.mxu0 0
        %733 = vmatprep.subr.bf16.mxu0 0
        %734 = vmatpush1.bf16.msra.mxu0 0
        %735 = vmatprep.subr.bf16.mxu0 0
        %736 = vmatpush1.bf16.msra.mxu0 0
        %737 = vmatprep.subr.bf16.mxu0 0
        %738 = vmatpush1.bf16.msra.mxu0 0
        %739 = vmatprep.subr.bf16.mxu0 0
        %740 = vmatpush1.bf16.msra.mxu0 0
        %741 = vmatprep.mubr.bf16.mxu0 0
        %742 = vmatmul.mubr.bf16.gmra.mrb[0].mxu0 %v704
        %v743 = vpop.f32.mrb[0].mxu0
        %v744 = vadd.f32 0.0, %v743
        %v745 = vpop.f32.mrb[0].mxu0
        %v746 = vpop.f32.mrb[0].mxu0
        %v747 = vpop.f32.mrb[0].mxu0
        %748 = vdwg.mxu0
        %v749 = vrcp.pop %v699
        %v750 = vmul.f32 %v744, %v749
        %v751 = vpack.c.bf16 %v750, %v750
        %v753 = vunpack.c.l.b16 %v751
        %v754 = vpack.c.b16 %v753, %v753
        %755 = vrot.lane.b32.xlu0 %v754, 48
        %v756 = vpop.permute.xlu0 %755
        %vm758 = vcmask 519552
        %759 = vst.msk [vmem:[#allocation2] sm:$0xf] %vm758, %v756
        %v760 = vld [vmem:[#allocation2] sm:$0xf]
        %v761 = vld [vmem:[#allocation8] sm:$0xf]
        %v762 = vld [vmem:[#allocation8 + $0x4] sm:$0xf]
        %v763 = vld [vmem:[#allocation8 + $0x8] sm:$0xf]
        %v764 = vld [vmem:[#allocation8 + $0xc] sm:$0xf]
        %v765 = vld [vmem:[#allocation8 + $0x10] sm:$0xf]
        %v766 = vld [vmem:[#allocation8 + $0x14] sm:$0xf]
        %v767 = vld [vmem:[#allocation8 + $0x18] sm:$0xf]
        %v768 = vld [vmem:[#allocation8 + $0x1c] sm:$0xf]
        %v777 = vunpack.c.l.b16 %v761
        %v778 = vunpack.c.l.b16 %v762
        %v779 = vunpack.c.l.b16 %v763
        %v780 = vunpack.c.l.b16 %v764
        %v781 = vunpack.c.l.b16 %v765
        %v782 = vunpack.c.l.b16 %v766
        %v783 = vunpack.c.l.b16 %v767
        %v784 = vunpack.c.l.b16 %v768
        %v785 = vpack.c.b16 %v778, %v777
        %v786 = vpack.c.b16 %v780, %v779
        %v787 = vpack.c.b16 %v782, %v781
        %v788 = vpack.c.b16 %v784, %v783
        %vm793 = vcmask 523264
        %v795 = vsel %vm793, %v760, 0
        %797 = vmatprep.subr.bf16.mxu0 0
        %798 = vmatpush1.bf16.msra.mxu0 %v785
        %799 = vmatprep.subr.bf16.mxu0 0
        %800 = vmatpush1.bf16.msra.mxu0 %v786
        %801 = vmatprep.subr.bf16.mxu0 0
        %802 = vmatpush1.bf16.msra.mxu0 %v787
        %803 = vmatprep.subr.bf16.mxu0 0
        %804 = vmatpush1.bf16.msra.mxu0 %v788
        %805 = vmatprep.subr.bf16.mxu0 0
        %806 = vmatpush1.bf16.msra.mxu0 0
        %807 = vmatprep.subr.bf16.mxu0 0
        %808 = vmatpush1.bf16.msra.mxu0 0
        %809 = vmatprep.subr.bf16.mxu0 0
        %810 = vmatpush1.bf16.msra.mxu0 0
        %811 = vmatprep.subr.bf16.mxu0 0
        %812 = vmatpush1.bf16.msra.mxu0 0
        %813 = vmatprep.subr.bf16.mxu0 0
        %814 = vmatpush1.bf16.msra.mxu0 0
        %815 = vmatprep.subr.bf16.mxu0 0
        %816 = vmatpush1.bf16.msra.mxu0 0
        %817 = vmatprep.subr.bf16.mxu0 0
        %818 = vmatpush1.bf16.msra.mxu0 0
        %819 = vmatprep.subr.bf16.mxu0 0
        %820 = vmatpush1.bf16.msra.mxu0 0
        %821 = vmatprep.subr.bf16.mxu0 0
        %822 = vmatpush1.bf16.msra.mxu0 0
        %823 = vmatprep.subr.bf16.mxu0 0
        %824 = vmatpush1.bf16.msra.mxu0 0
        %825 = vmatprep.subr.bf16.mxu0 0
        %826 = vmatpush1.bf16.msra.mxu0 0
        %827 = vmatprep.subr.bf16.mxu0 0
        %828 = vmatpush1.bf16.msra.mxu0 0
        %829 = vmatprep.mubr.bf16.mxu0 0
        %830 = vmatmul.mubr.bf16.gmra.mrb[0].mxu0 %v795
        %v831 = vpop.f32.mrb[0].mxu0
        %v832 = vadd.f32 0.0, %v831
        %v833 = vpop.f32.mrb[0].mxu0
        %v834 = vpop.f32.mrb[0].mxu0
        %v835 = vpop.f32.mrb[0].mxu0
        %836 = vdwg.mxu0
        %837 = vst [vmem:[%s214] sm:$0xff] %v832
        %s838 = sand.u32 %s97, 1
        %s839 = scalar_lea.sflag [#allocation5], %s838
        %s840 = sand.u32 %s97, 1
        %s841 = smul.addr %s840, 8
        %s842 = scalar_lea.vmem [#allocation9], %s841
        // Predicated region
        $region45: #{tpu_custom_call.1} parent=31 // pred_check
          %p843 = pneg %p107
        $region46: #{tpu_custom_call.1} parent=31 // pred_check_branch
          %845 = sbr.rel (%p843) target = $region48
        $region47: #{tpu_custom_call.1} parent=31 // pred_region
          %s847 = ssub.s32 128, 128
          %848 = vsyncadd %s839, %s847
          %s849 = smul.addr %s21, 128
          %s850 = scalar_lea.hbm %s3, %s849
          %s852 = sshll.u32 %s842, 4
          %s853 = int_to_ptr.vmem [resolvable:$true] %s852
          %855 = dma.vmem_to_hbm [thread:$0]  %s853, 128, %s850, %s839
        $region48: #{tpu_custom_call.1} parent=31 // pred_fallthru
          _
      $region32: #{tpu_custom_call.1} parent=5 // pred_fallthru
        _
      %p856 = scmp.le.s32.totalorder 2, %s16
      // Predicated region
      $region49: #{tpu_custom_call.1} parent=5 // pred_check
        %p857 = pneg %p856
      $region50: #{tpu_custom_call.1} parent=5 // pred_check_branch
        %859 = sbr.rel (%p857) target = $region52
      $region51: #{tpu_custom_call.1} parent=5 // pred_region
        %s860 = ssub.s32 %s16, 2
        // Predicated region
        $region53: #{tpu_custom_call.1} parent=51 // pred_check
          %p861 = pneg %p113
        $region54: #{tpu_custom_call.1} parent=51 // pred_check_branch
          %863 = sbr.rel (%p861) target = $region56
        $region55: #{tpu_custom_call.1} parent=51 // pred_region
          %s864 = sand.u32 %s98, 1
          %s865 = scalar_lea.sflag [#allocation5], %s864
          %s866 = sand.u32 %s98, 1
          %s867 = smul.addr %s866, 8
          %s868 = scalar_lea.vmem [#allocation9], %s867
          %869 = dma.done %s865, 128
        $region56: #{tpu_custom_call.1} parent=51 // pred_fallthru
          _
      $region52: #{tpu_custom_call.1} parent=5 // pred_fallthru
        _
    $region6: #{tpu_custom_call.1} parent=1 // loop_footer
      %s20 = sadd.s32 1, %s16
    $region7: #{tpu_custom_call.1} parent=1 // loop_footer_branch
      %15 = sbr.rel target = $region3
    $region8: #{tpu_custom_call.1} parent=1 // loop_exit
      _
    %870 = vsyncpa [#allocation4], 1
    %s871 = scalar_lea.sflag [#allocation4], 1
    %872 = vsyncpa %s871, 1
    %873 = vsyncpa [#allocation7], 1
    %874 = vsyncpa [#allocation5], 1
    %s875 = scalar_lea.sflag [#allocation5], 1
    %876 = vsyncpa %s875, 1

</llo_original>
